<compile_context>
chip_gen: v5e
topology: v5e:2x2
jax: 0.10.0
libtpu: 0.0.40
codegen_flags: <defaults>
</compile_context>

<pallas_src>
import jax
import jax.numpy as jnp
from jax.experimental import pallas as pl
from jax.experimental.pallas import tpu as pltpu


# ---------------------------------------------------------------------------
# Pallas kernel: both Q heads in one body, concat-free, bf16 weights,
# VPU/XLU layer-3 (row-vector multiply + lane reduction), f32 accumulation.
# ---------------------------------------------------------------------------
def _qnetwork_kernel(state_ref, action_ref,
                     w1s_ref, w1a_ref, b1_ref,
                     w2a_ref, b2a_ref, w2b_ref, b2b_ref,
                     w3a_ref, w3b_ref, b3_ref,
                     q1_ref, q2_ref):
    H = w2a_ref.shape[0]  # hidden dim (static)

    s = state_ref[...]    # already bf16 (cast in wrapper)
    a = action_ref[...]   # already bf16

    # Fused layer 1 for both heads (no concat needed): (B, 2H), f32 accumulate.
    h1 = (jnp.dot(s, w1s_ref[...], preferred_element_type=jnp.float32)
          + jnp.dot(a, w1a_ref[...], preferred_element_type=jnp.float32)
          + b1_ref[...])
    h1 = jnp.maximum(h1, 0.0).astype(jnp.bfloat16)

    # Split hidden on a 128-lane-aligned boundary (H = 256) -> no hidden copies.
    h1a = h1[:, :H]
    h1b = h1[:, H:]

    # Layer 2: two (B,H)@(H,H) MXU dots, f32 accumulate, ReLU on VPU.
    h2a = jnp.maximum(
        jnp.dot(h1a, w2a_ref[...], preferred_element_type=jnp.float32)
        + b2a_ref[...], 0.0)
    h2b = jnp.maximum(
        jnp.dot(h1b, w2b_ref[...], preferred_element_type=jnp.float32)
        + b2b_ref[...], 0.0)

    # Layer 3: dense (1, H) row vector per head -> elementwise multiply (VPU)
    # + lane reduction (XLU).  No zero-padded matmul, no 128-lane output slab.
    w3a = w3a_ref[...].astype(jnp.float32)   # (1, H)
    w3b = w3b_ref[...].astype(jnp.float32)   # (1, H)
    q1 = jnp.sum(h2a * w3a, axis=-1, keepdims=True) + b3_ref[:, 0:1]
    q2 = jnp.sum(h2b * w3b, axis=-1, keepdims=True) + b3_ref[:, 1:2]

    q1_ref[...] = q1.astype(q1_ref.dtype)
    q2_ref[...] = q2.astype(q2_ref.dtype)


# ---------------------------------------------------------------------------
# Parameter construction.  Mimics PyTorch default Linear init
# (uniform(-1/sqrt(fan_in), 1/sqrt(fan_in))), then packs into the fused /
# split layout consumed by the kernel.  Weights -> bf16, biases stay f32.
# ---------------------------------------------------------------------------
def _init_linear(key, fan_in, fan_out, dtype=jnp.float32):
    kw, kb = jax.random.split(key)
    bound = 1.0 / (float(fan_in) ** 0.5)
    w = jax.random.uniform(kw, (fan_in, fan_out), dtype, minval=-bound, maxval=bound)
    b = jax.random.uniform(kb, (1, fan_out), dtype, minval=-bound, maxval=bound)
    return w, b


def init_qnetwork_params(key, state_dim, action_dim, hidden_dim=256,
                         weight_dtype=jnp.bfloat16):
    in_dim = state_dim + action_dim
    keys = jax.random.split(key, 6)
    # q1 head
    w1a_, b1a_ = _init_linear(keys[0], in_dim, hidden_dim)
    w2a_, b2a_ = _init_linear(keys[1], hidden_dim, hidden_dim)
    w3a_, b3a_ = _init_linear(keys[2], hidden_dim, 1)
    # q2 head
    w1b_, b1b_ = _init_linear(keys[3], in_dim, hidden_dim)
    w2b_, b2b_ = _init_linear(keys[4], hidden_dim, hidden_dim)
    w3b_, b3b_ = _init_linear(keys[5], hidden_dim, 1)

    # Fused layer-1 weight (both heads along the output axis), then split by
    # state vs. action rows so no runtime concat of [state, action] is needed.
    w1_fused = jnp.concatenate([w1a_, w1b_], axis=1)            # (in_dim, 2H)
    w1s = w1_fused[:state_dim, :].astype(weight_dtype)          # (sd, 2H)
    w1a = w1_fused[state_dim:, :].astype(weight_dtype)          # (ad, 2H)
    b1 = jnp.concatenate([b1a_, b1b_], axis=1)                  # (1, 2H) f32

    w2a = w2a_.astype(weight_dtype)
    w2b = w2b_.astype(weight_dtype)

    # Layer-3 weights: dense (1, H) row vectors (no zero padding).
    w3a_row = w3a_.T.astype(weight_dtype)                       # (1, H)
    w3b_row = w3b_.T.astype(weight_dtype)                       # (1, H)
    b3 = jnp.concatenate([b3a_, b3b_], axis=1)                  # (1, 2) f32

    return (w1s, w1a, b1, w2a, b2a_, w2b, b2b_, w3a_row, w3b_row, b3)


# ---------------------------------------------------------------------------
# Wrapper: batch-tiled pallas_call, weights VMEM-resident across grid steps.
# ---------------------------------------------------------------------------
def qnetwork_forward(state, action, params):
    (w1s, w1a, b1, w2a, b2a, w2b, b2b, w3a_row, w3b_row, b3) = params
    B, state_dim = state.shape
    action_dim = action.shape[1]
    H = w2a.shape[0]

    # Cast activations to bf16 in the wrapper (halves input DMA + buffers).
    state = state.astype(jnp.bfloat16)
    action = action.astype(jnp.bfloat16)

    # Large batch tile (grid steps cost ~0.35 us each; weights are already
    # VMEM-resident so small tiles buy nothing).  Cap at 1024 rows so f32
    # intermediates + weights fit the per-generation scoped-VMEM limits.
    MAX_TILE_B = 1024
    B_pad = max(16, ((B + 15) // 16) * 16)   # multiple of 16 for bf16 packing
    if B_pad <= MAX_TILE_B:
        tile_b = B_pad
    else:
        tile_b = MAX_TILE_B
        B_pad = ((B_pad + tile_b - 1) // tile_b) * tile_b
    if B_pad != B:
        pad = B_pad - B
        state = jnp.pad(state, ((0, pad), (0, 0)))
        action = jnp.pad(action, ((0, pad), (0, 0)))

    grid = (B_pad // tile_b,)

    # Megacore: with a single grid step, "parallel" cannot help and would only
    # duplicate the resident weight DMA per TensorCore; with multiple batch
    # tiles the 2x weight fetch is an acceptable trade for batch sharding.
    dim_sem = ("arbitrary",) if grid[0] == 1 else ("parallel",)

    def batch_spec(feat):
        return pl.BlockSpec((tile_b, feat), lambda i: (i, 0))

    def resident_spec(arr):
        # Constant index_map -> block stays resident in VMEM across grid steps.
        return pl.BlockSpec(arr.shape, lambda i: (0, 0))

    weights = (w1s, w1a, b1, w2a, b2a, w2b, b2b, w3a_row, w3b_row, b3)
    weight_bytes = sum(int(p.size) * p.dtype.itemsize for p in weights)
    act_bytes = (int(state.size) + int(action.size)) * 2 + 2 * B_pad * 4
    flops = 2 * B_pad * ((state_dim + action_dim) * 2 * H   # fused layer 1
                         + 2 * H * H                        # both layer 2s
                         + 2 * H)                           # both layer-3 reductions

    q1, q2 = pl.pallas_call(
        _qnetwork_kernel,
        out_shape=(jax.ShapeDtypeStruct((B_pad, 1), jnp.float32),
                   jax.ShapeDtypeStruct((B_pad, 1), jnp.float32)),
        grid=grid,
        in_specs=[
            batch_spec(state_dim),
            batch_spec(action_dim),
            resident_spec(w1s), resident_spec(w1a), resident_spec(b1),
            resident_spec(w2a), resident_spec(b2a),
            resident_spec(w2b), resident_spec(b2b),
            resident_spec(w3a_row), resident_spec(w3b_row), resident_spec(b3),
        ],
        out_specs=(pl.BlockSpec((tile_b, 1), lambda i: (i, 0)),
                   pl.BlockSpec((tile_b, 1), lambda i: (i, 0))),
        compiler_params=pltpu.CompilerParams(
            dimension_semantics=dim_sem,
            vmem_limit_bytes=32 * 1024 * 1024),
        cost_estimate=pl.CostEstimate(
            flops=int(flops),
            transcendentals=0,
            bytes_accessed=int(weight_bytes + act_bytes)),
    )(state, action, *weights)

    return q1[:B], q2[:B]


# ---------------------------------------------------------------------------
# Pure-JAX reference (same bf16-weight / f32-accumulate math as the kernel).
# Note: bf16 weights imply ~1e-2 relative deviation from a pure-f32 PyTorch
# forward; this reference bounds kernel-vs-XLA agreement, not bf16-vs-f32.
# ---------------------------------------------------------------------------
def _reference_forward(state, action, params):
    (w1s, w1a, b1, w2a, b2a, w2b, b2b, w3a_row, w3b_row, b3) = params
    H = w2a.shape[0]
    s = state.astype(jnp.bfloat16)
    a = action.astype(jnp.bfloat16)

    h1 = (jnp.dot(s, w1s, preferred_element_type=jnp.float32)
          + jnp.dot(a, w1a, preferred_element_type=jnp.float32) + b1)
    h1 = jax.nn.relu(h1).astype(jnp.bfloat16)
    h1a, h1b = h1[:, :H], h1[:, H:]

    h2a = jax.nn.relu(jnp.dot(h1a, w2a, preferred_element_type=jnp.float32) + b2a)
    h2b = jax.nn.relu(jnp.dot(h1b, w2b, preferred_element_type=jnp.float32) + b2b)

    q1 = jnp.sum(h2a * w3a_row.astype(jnp.float32), axis=-1, keepdims=True) + b3[:, 0:1]
    q2 = jnp.sum(h2b * w3b_row.astype(jnp.float32), axis=-1, keepdims=True) + b3[:, 1:2]
    return q1, q2


if __name__ == "__main__":
    # Small deterministic problem: batch=8, state_dim=12, action_dim=4, hidden=256.
    state_dim, action_dim, hidden_dim, batch = 12, 4, 256, 8

    key = jax.random.PRNGKey(0)
    k_params, k_state, k_action = jax.random.split(key, 3)

    params = init_qnetwork_params(k_params, state_dim, action_dim, hidden_dim)
    state = jax.random.normal(k_state, (batch, state_dim), jnp.float32)
    action = jax.random.normal(k_action, (batch, action_dim), jnp.float32)

    q1, q2 = qnetwork_forward(state, action, params)
    jax.block_until_ready((q1, q2))

    # Correctness check against a pure-JAX reference using the same packed
    # bf16 parameters.
    r1, r2 = _reference_forward(state, action, params)
    assert q1.shape == (batch, 1) and q2.shape == (batch, 1)
    assert jnp.allclose(q1, r1, atol=2e-3, rtol=2e-3)
    assert jnp.allclose(q2, r2, atol=2e-3, rtol=2e-3)

    print("KERNEL_OK")
</pallas_src>

<mosaic_0001>
module attributes {stable_mosaic.version = 11 : i64} {
  func.func @_qnetwork_kernel(%arg0: i32, %arg1: memref<16x12xbf16, #tpu.memory_space<vmem>>, %arg2: memref<16x4xbf16, #tpu.memory_space<vmem>>, %arg3: memref<12x512xbf16, #tpu.memory_space<vmem>>, %arg4: memref<4x512xbf16, #tpu.memory_space<vmem>>, %arg5: memref<1x512xf32, #tpu.memory_space<vmem>>, %arg6: memref<256x256xbf16, #tpu.memory_space<vmem>>, %arg7: memref<1x256xf32, #tpu.memory_space<vmem>>, %arg8: memref<256x256xbf16, #tpu.memory_space<vmem>>, %arg9: memref<1x256xf32, #tpu.memory_space<vmem>>, %arg10: memref<1x256xbf16, #tpu.memory_space<vmem>>, %arg11: memref<1x256xbf16, #tpu.memory_space<vmem>>, %arg12: memref<1x2xf32, #tpu.memory_space<vmem>>, %arg13: memref<16x1xf32, #tpu.memory_space<vmem>>, %arg14: memref<16x1xf32, #tpu.memory_space<vmem>>) attributes {dimension_semantics = [#tpu.dimension_semantics<arbitrary>], iteration_bounds = array<i64: 1>, scalar_prefetch = 0 : i64, scratch_operands = 0 : i64, tpu.core_type = #tpu.core_type<tc>, window_params = [{transform_indices = @transform_0, window_bounds = array<i64: 16, 12>}, {transform_indices = @transform_1, window_bounds = array<i64: 16, 4>}, {pipeline_mode = #tpu.pipeline_mode<synchronous>, transform_indices = @transform_2, window_bounds = array<i64: 12, 512>}, {pipeline_mode = #tpu.pipeline_mode<synchronous>, transform_indices = @transform_3, window_bounds = array<i64: 4, 512>}, {pipeline_mode = #tpu.pipeline_mode<synchronous>, transform_indices = @transform_4, window_bounds = array<i64: 1, 512>}, {pipeline_mode = #tpu.pipeline_mode<synchronous>, transform_indices = @transform_5, window_bounds = array<i64: 256, 256>}, {pipeline_mode = #tpu.pipeline_mode<synchronous>, transform_indices = @transform_6, window_bounds = array<i64: 1, 256>}, {pipeline_mode = #tpu.pipeline_mode<synchronous>, transform_indices = @transform_7, window_bounds = array<i64: 256, 256>}, {pipeline_mode = #tpu.pipeline_mode<synchronous>, transform_indices = @transform_8, window_bounds = array<i64: 1, 256>}, {pipeline_mode = #tpu.pipeline_mode<synchronous>, transform_indices = @transform_9, window_bounds = array<i64: 1, 256>}, {pipeline_mode = #tpu.pipeline_mode<synchronous>, transform_indices = @transform_10, window_bounds = array<i64: 1, 256>}, {pipeline_mode = #tpu.pipeline_mode<synchronous>, transform_indices = @transform_11, window_bounds = array<i64: 1, 2>}, {transform_indices = @transform_12, window_bounds = array<i64: 16, 1>}, {transform_indices = @transform_13, window_bounds = array<i64: 16, 1>}]} {
    %c0 = arith.constant 0 : index
    %c0_0 = arith.constant 0 : index
    %0 = vector.load %arg1[%c0, %c0_0] : memref<16x12xbf16, #tpu.memory_space<vmem>>, vector<16x12xbf16>
    %c0_1 = arith.constant 0 : index
    %c0_2 = arith.constant 0 : index
    %1 = vector.load %arg2[%c0_1, %c0_2] : memref<16x4xbf16, #tpu.memory_space<vmem>>, vector<16x4xbf16>
    %c0_3 = arith.constant 0 : index
    %c0_4 = arith.constant 0 : index
    %2 = vector.load %arg3[%c0_3, %c0_4] : memref<12x512xbf16, #tpu.memory_space<vmem>>, vector<12x512xbf16>
    %cst = arith.constant dense<0.000000e+00> : vector<16x512xf32>
    %3 = tpu.matmul %0, %2, %cst {dimension_numbers = #tpu.dot_dimension_numbers<[1], [0], [0], [1], [0, 0, 1, 1], [], []>} : vector<16x12xbf16>, vector<12x512xbf16>, vector<16x512xf32> -> vector<16x512xf32>
    %c0_5 = arith.constant 0 : index
    %c0_6 = arith.constant 0 : index
    %4 = vector.load %arg4[%c0_5, %c0_6] : memref<4x512xbf16, #tpu.memory_space<vmem>>, vector<4x512xbf16>
    %cst_7 = arith.constant dense<0.000000e+00> : vector<16x512xf32>
    %5 = tpu.matmul %1, %4, %cst_7 {dimension_numbers = #tpu.dot_dimension_numbers<[1], [0], [0], [1], [0, 0, 1, 1], [], []>} : vector<16x4xbf16>, vector<4x512xbf16>, vector<16x512xf32> -> vector<16x512xf32>
    %6 = arith.addf %3, %5 : vector<16x512xf32>
    %c0_8 = arith.constant 0 : index
    %c0_9 = arith.constant 0 : index
    %7 = vector.load %arg5[%c0_8, %c0_9] : memref<1x512xf32, #tpu.memory_space<vmem>>, vector<1x512xf32>
    %8 = vector.broadcast %7 : vector<1x512xf32> to vector<16x512xf32>
    %9 = arith.addf %6, %8 : vector<16x512xf32>
    %cst_10 = arith.constant 0.000000e+00 : f32
    %10 = vector.broadcast %cst_10 : f32 to vector<16x512xf32>
    %11 = arith.maximumf %9, %10 : vector<16x512xf32>
    %12 = arith.truncf %11 : vector<16x512xf32> to vector<16x512xbf16>
    %13 = vector.extract_strided_slice %12 {offsets = [0, 0], sizes = [16, 256], strides = [1, 1]} : vector<16x512xbf16> to vector<16x256xbf16>
    %14 = vector.extract_strided_slice %12 {offsets = [0, 256], sizes = [16, 256], strides = [1, 1]} : vector<16x512xbf16> to vector<16x256xbf16>
    %c0_11 = arith.constant 0 : index
    %c0_12 = arith.constant 0 : index
    %15 = vector.load %arg6[%c0_11, %c0_12] : memref<256x256xbf16, #tpu.memory_space<vmem>>, vector<256x256xbf16>
    %cst_13 = arith.constant dense<0.000000e+00> : vector<16x256xf32>
    %16 = tpu.matmul %13, %15, %cst_13 {dimension_numbers = #tpu.dot_dimension_numbers<[1], [0], [0], [1], [0, 0, 1, 1], [], []>} : vector<16x256xbf16>, vector<256x256xbf16>, vector<16x256xf32> -> vector<16x256xf32>
    %c0_14 = arith.constant 0 : index
    %c0_15 = arith.constant 0 : index
    %17 = vector.load %arg7[%c0_14, %c0_15] : memref<1x256xf32, #tpu.memory_space<vmem>>, vector<1x256xf32>
    %18 = vector.broadcast %17 : vector<1x256xf32> to vector<16x256xf32>
    %19 = arith.addf %16, %18 : vector<16x256xf32>
    %cst_16 = arith.constant 0.000000e+00 : f32
    %20 = vector.broadcast %cst_16 : f32 to vector<16x256xf32>
    %21 = arith.maximumf %19, %20 : vector<16x256xf32>
    %c0_17 = arith.constant 0 : index
    %c0_18 = arith.constant 0 : index
    %22 = vector.load %arg8[%c0_17, %c0_18] : memref<256x256xbf16, #tpu.memory_space<vmem>>, vector<256x256xbf16>
    %cst_19 = arith.constant dense<0.000000e+00> : vector<16x256xf32>
    %23 = tpu.matmul %14, %22, %cst_19 {dimension_numbers = #tpu.dot_dimension_numbers<[1], [0], [0], [1], [0, 0, 1, 1], [], []>} : vector<16x256xbf16>, vector<256x256xbf16>, vector<16x256xf32> -> vector<16x256xf32>
    %c0_20 = arith.constant 0 : index
    %c0_21 = arith.constant 0 : index
    %24 = vector.load %arg9[%c0_20, %c0_21] : memref<1x256xf32, #tpu.memory_space<vmem>>, vector<1x256xf32>
    %25 = vector.broadcast %24 : vector<1x256xf32> to vector<16x256xf32>
    %26 = arith.addf %23, %25 : vector<16x256xf32>
    %cst_22 = arith.constant 0.000000e+00 : f32
    %27 = vector.broadcast %cst_22 : f32 to vector<16x256xf32>
    %28 = arith.maximumf %26, %27 : vector<16x256xf32>
    %c0_23 = arith.constant 0 : index
    %c0_24 = arith.constant 0 : index
    %29 = vector.load %arg10[%c0_23, %c0_24] : memref<1x256xbf16, #tpu.memory_space<vmem>>, vector<1x256xbf16>
    %30 = arith.extf %29 : vector<1x256xbf16> to vector<1x256xf32>
    %c0_25 = arith.constant 0 : index
    %c0_26 = arith.constant 0 : index
    %31 = vector.load %arg11[%c0_25, %c0_26] : memref<1x256xbf16, #tpu.memory_space<vmem>>, vector<1x256xbf16>
    %32 = arith.extf %31 : vector<1x256xbf16> to vector<1x256xf32>
    %33 = vector.broadcast %30 : vector<1x256xf32> to vector<16x256xf32>
    %34 = arith.mulf %21, %33 : vector<16x256xf32>
    %cst_27 = arith.constant dense<0.000000e+00> : vector<16xf32>
    %35 = vector.multi_reduction <add>, %34, %cst_27 [1] : vector<16x256xf32> to vector<16xf32>
    %36 = vector.shape_cast %35 : vector<16xf32> to vector<16x1xf32>
    %c0_28 = arith.constant 0 : index
    %c0_29 = arith.constant 0 : index
    %37 = vector.load %arg12[%c0_28, %c0_29] : memref<1x2xf32, #tpu.memory_space<vmem>>, vector<1x1xf32>
    %38 = vector.broadcast %37 : vector<1x1xf32> to vector<16x1xf32>
    %39 = arith.addf %36, %38 : vector<16x1xf32>
    %40 = vector.broadcast %32 : vector<1x256xf32> to vector<16x256xf32>
    %41 = arith.mulf %28, %40 : vector<16x256xf32>
    %cst_30 = arith.constant dense<0.000000e+00> : vector<16xf32>
    %42 = vector.multi_reduction <add>, %41, %cst_30 [1] : vector<16x256xf32> to vector<16xf32>
    %43 = vector.shape_cast %42 : vector<16xf32> to vector<16x1xf32>
    %c0_31 = arith.constant 0 : index
    %c1 = arith.constant 1 : index
    %44 = vector.load %arg12[%c0_31, %c1] : memref<1x2xf32, #tpu.memory_space<vmem>>, vector<1x1xf32>
    %45 = vector.broadcast %44 : vector<1x1xf32> to vector<16x1xf32>
    %46 = arith.addf %43, %45 : vector<16x1xf32>
    %c0_32 = arith.constant 0 : index
    %c0_33 = arith.constant 0 : index
    %47 = vector.load %arg13[%c0_32, %c0_33] : memref<16x1xf32, #tpu.memory_space<vmem>>, vector<16x1xf32>
    tpu.vector_store %arg13[%c0_32, %c0_33], %39 {strides = array<i32>} : memref<16x1xf32, #tpu.memory_space<vmem>>, vector<16x1xf32>,
    %c0_34 = arith.constant 0 : index
    %c0_35 = arith.constant 0 : index
    %48 = vector.load %arg14[%c0_34, %c0_35] : memref<16x1xf32, #tpu.memory_space<vmem>>, vector<16x1xf32>
    tpu.vector_store %arg14[%c0_34, %c0_35], %46 {strides = array<i32>} : memref<16x1xf32, #tpu.memory_space<vmem>>, vector<16x1xf32>,
    return
  }
  func.func @transform_0(%arg0: i32) -> (i32, i32) {
    %c0_i32 = arith.constant 0 : i32
    %c0_i32_0 = arith.constant 0 : i32
    return %arg0, %c0_i32 : i32, i32
  }
  func.func @transform_1(%arg0: i32) -> (i32, i32) {
    %c0_i32 = arith.constant 0 : i32
    %c0_i32_0 = arith.constant 0 : i32
    return %arg0, %c0_i32 : i32, i32
  }
  func.func @transform_2(%arg0: i32) -> (i32, i32) {
    %c0_i32 = arith.constant 0 : i32
    %c0_i32_0 = arith.constant 0 : i32
    %c0_i32_1 = arith.constant 0 : i32
    return %c0_i32, %c0_i32_0 : i32, i32
  }
  func.func @transform_3(%arg0: i32) -> (i32, i32) {
    %c0_i32 = arith.constant 0 : i32
    %c0_i32_0 = arith.constant 0 : i32
    %c0_i32_1 = arith.constant 0 : i32
    return %c0_i32, %c0_i32_0 : i32, i32
  }
  func.func @transform_4(%arg0: i32) -> (i32, i32) {
    %c0_i32 = arith.constant 0 : i32
    %c0_i32_0 = arith.constant 0 : i32
    %c0_i32_1 = arith.constant 0 : i32
    return %c0_i32, %c0_i32_0 : i32, i32
  }
  func.func @transform_5(%arg0: i32) -> (i32, i32) {
    %c0_i32 = arith.constant 0 : i32
    %c0_i32_0 = arith.constant 0 : i32
    %c0_i32_1 = arith.constant 0 : i32
    return %c0_i32, %c0_i32_0 : i32, i32
  }
  func.func @transform_6(%arg0: i32) -> (i32, i32) {
    %c0_i32 = arith.constant 0 : i32
    %c0_i32_0 = arith.constant 0 : i32
    %c0_i32_1 = arith.constant 0 : i32
    return %c0_i32, %c0_i32_0 : i32, i32
  }
  func.func @transform_7(%arg0: i32) -> (i32, i32) {
    %c0_i32 = arith.constant 0 : i32
    %c0_i32_0 = arith.constant 0 : i32
    %c0_i32_1 = arith.constant 0 : i32
    return %c0_i32, %c0_i32_0 : i32, i32
  }
  func.func @transform_8(%arg0: i32) -> (i32, i32) {
    %c0_i32 = arith.constant 0 : i32
    %c0_i32_0 = arith.constant 0 : i32
    %c0_i32_1 = arith.constant 0 : i32
    return %c0_i32, %c0_i32_0 : i32, i32
  }
  func.func @transform_9(%arg0: i32) -> (i32, i32) {
    %c0_i32 = arith.constant 0 : i32
    %c0_i32_0 = arith.constant 0 : i32
    %c0_i32_1 = arith.constant 0 : i32
    return %c0_i32, %c0_i32_0 : i32, i32
  }
  func.func @transform_10(%arg0: i32) -> (i32, i32) {
    %c0_i32 = arith.constant 0 : i32
    %c0_i32_0 = arith.constant 0 : i32
    %c0_i32_1 = arith.constant 0 : i32
    return %c0_i32, %c0_i32_0 : i32, i32
  }
  func.func @transform_11(%arg0: i32) -> (i32, i32) {
    %c0_i32 = arith.constant 0 : i32
    %c0_i32_0 = arith.constant 0 : i32
    %c0_i32_1 = arith.constant 0 : i32
    return %c0_i32, %c0_i32_0 : i32, i32
  }
  func.func @transform_12(%arg0: i32) -> (i32, i32) {
    %c0_i32 = arith.constant 0 : i32
    %c0_i32_0 = arith.constant 0 : i32
    return %arg0, %c0_i32 : i32, i32
  }
  func.func @transform_13(%arg0: i32) -> (i32, i32) {
    %c0_i32 = arith.constant 0 : i32
    %c0_i32_0 = arith.constant 0 : i32
    return %arg0, %c0_i32 : i32, i32
  }
}

</mosaic_0001>

<llo_original>
// kernel: tpu_custom_call.1
$region0: #{tpu_custom_call.1}
  #allocation0 [shape = 'u32[]', space=smem, size = 0x4, offset = 0x4, fixed_abs, tag = 'smem constant byte address 0x4 - core index']
  #allocation1 [shape = 'u32[72,128]{1,0:T(1,128)}', space=vmem, size = 0x9000, scoped, tag = 'internal scratch']
  %s0 = inlined_call_operand.vmem [shape: bf16[16,12], index: 0, kind: input, shape index: {}]
  %s1 = inlined_call_operand.vmem [shape: bf16[16,4], index: 1, kind: input, shape index: {}]
  %s2 = inlined_call_operand.hbm [shape: bf16[12,512], index: 2, kind: input, shape index: {}]
  %s3 = inlined_call_operand.hbm [shape: bf16[4,512], index: 3, kind: input, shape index: {}]
  %s4 = inlined_call_operand.vmem [shape: f32[1,512], index: 4, kind: input, shape index: {}]
  %s5 = inlined_call_operand.hbm [shape: bf16[256,256], index: 5, kind: input, shape index: {}]
  %s6 = inlined_call_operand.vmem [shape: f32[1,256], index: 6, kind: input, shape index: {}]
  %s7 = inlined_call_operand.hbm [shape: bf16[256,256], index: 7, kind: input, shape index: {}]
  %s8 = inlined_call_operand.vmem [shape: f32[1,256], index: 8, kind: input, shape index: {}]
  %s9 = inlined_call_operand.vmem [shape: bf16[1,256], index: 9, kind: input, shape index: {}]
  %s10 = inlined_call_operand.hbm [shape: bf16[1,256], index: 10, kind: input, shape index: {}]
  %s11 = inlined_call_operand.vmem [shape: f32[1,2], index: 11, kind: input, shape index: {}]
  %s12 = inlined_call_operand.vmem [shape: f32[16,1], index: 12, kind: output, shape index: {0}]
  %s13 = inlined_call_operand.vmem [shape: f32[16,1], index: 13, kind: output, shape index: {1}]
  %14 = xla_tuple %s12, %s13
  %s15 = sld [smem:[#allocation0]]
  $region86: #{tpu_custom_call.1} parent=0
    _
  %s17 = ssub.s32 1, %s15
  %s18 = scalar_select 0, %s17, %s15
  $region1: #{tpu_custom_call.1} parent=0
    #allocation2 [shape = 'u8[16384]{0}', space=vmem, size = 0x4000, scoped, tag = 'input window, operand 2, single buffered']
    #allocation3 [shape = 's32[1]{0}', space=sflag, size = 0x4, scoped, tag = 'scoped memory for tpu_custom_call.1']
    #allocation4 [shape = 'u8[4096]{0}', space=vmem, size = 0x1000, scoped, tag = 'input window, operand 3, single buffered']
    #allocation5 [shape = 's32[1]{0}', space=sflag, size = 0x4, scoped, tag = 'scoped memory for tpu_custom_call.1']
    #allocation6 [shape = 'u8[131072]{0}', space=vmem, size = 0x20000, scoped, tag = 'input window, operand 5, single buffered']
    #allocation7 [shape = 'u8[131072]{0}', space=vmem, size = 0x20000, scoped, tag = 'input window, operand 7, single buffered']
    #allocation8 [shape = 's32[1]{0}', space=sflag, size = 0x4, scoped, tag = 'scoped memory for tpu_custom_call.1']
    #allocation9 [shape = 'u8[1024]{0}', space=vmem, size = 0x400, scoped, tag = 'input window, operand 10, single buffered']
    %19 = vsyncpa [#allocation3], 0
    %20 = vsyncpa [#allocation5], 0
    %21 = vsyncpa [#allocation8], 0
    // Predicated region
    $region2: #{tpu_custom_call.1} parent=1 // pred_check
      _
    $region3: #{tpu_custom_call.1} parent=1 // pred_check_branch
      %23 = sbr.rel (0) target = $region5
    $region4: #{tpu_custom_call.1} parent=1 // pred_region
      _
    $region5: #{tpu_custom_call.1} parent=1 // pred_fallthru
      _
    // Predicated region
    $region6: #{tpu_custom_call.1} parent=1 // pred_check
      _
    $region7: #{tpu_custom_call.1} parent=1 // pred_check_branch
      %25 = sbr.rel (0) target = $region9
    $region8: #{tpu_custom_call.1} parent=1 // pred_region
      _
    $region9: #{tpu_custom_call.1} parent=1 // pred_fallthru
      _
    // Predicated region
    $region10: #{tpu_custom_call.1} parent=1 // pred_check
      _
    $region11: #{tpu_custom_call.1} parent=1 // pred_check_branch
      %27 = sbr.rel (0) target = $region13
    $region12: #{tpu_custom_call.1} parent=1 // pred_region
      %29 = vsyncadd [#allocation3], 0
      %s30 = sshll.u32 %s2, 4
      %s31 = int_to_ptr.hbm [resolvable:$true] %s30
      %s32 = sshll.u32 [#allocation2], 4
      %s33 = int_to_ptr.vmem [resolvable:$true] %s32
      %38 = dma.hbm_to_vmem [thread:$0]  %s31, 512, %s33, [#allocation3], 256, 256, 16
    $region13: #{tpu_custom_call.1} parent=1 // pred_fallthru
      _
    // Predicated region
    $region14: #{tpu_custom_call.1} parent=1 // pred_check
      _
    $region15: #{tpu_custom_call.1} parent=1 // pred_check_branch
      %40 = sbr.rel (0) target = $region17
    $region16: #{tpu_custom_call.1} parent=1 // pred_region
      %42 = vsyncadd [#allocation5], 0
      %s44 = sshll.u32 %s3, 4
      %s45 = int_to_ptr.hbm [resolvable:$true] %s44
      %s46 = sshll.u32 [#allocation4], 4
      %s47 = int_to_ptr.vmem [resolvable:$true] %s46
      %49 = dma.hbm_to_vmem [thread:$0]  %s45, 128, %s47, [#allocation5]
    $region17: #{tpu_custom_call.1} parent=1 // pred_fallthru
      _
    // Predicated region
    $region18: #{tpu_custom_call.1} parent=1 // pred_check
      _
    $region19: #{tpu_custom_call.1} parent=1 // pred_check_branch
      %51 = sbr.rel (0) target = $region21
    $region20: #{tpu_custom_call.1} parent=1 // pred_region
      _
    $region21: #{tpu_custom_call.1} parent=1 // pred_fallthru
      _
    // Predicated region
    $region22: #{tpu_custom_call.1} parent=1 // pred_check
      _
    $region23: #{tpu_custom_call.1} parent=1 // pred_check_branch
      %53 = sbr.rel (0) target = $region25
    $region24: #{tpu_custom_call.1} parent=1 // pred_region
      %55 = vsyncadd [#allocation5], 0
      %s56 = sshll.u32 %s5, 4
      %s57 = int_to_ptr.hbm [resolvable:$true] %s56
      %s58 = sshll.u32 [#allocation6], 4
      %s59 = int_to_ptr.vmem [resolvable:$true] %s58
      %64 = dma.hbm_to_vmem [thread:$0]  %s57, 4096, %s59, [#allocation5], 128, 128, 8
    $region25: #{tpu_custom_call.1} parent=1 // pred_fallthru
      _
    // Predicated region
    $region26: #{tpu_custom_call.1} parent=1 // pred_check
      _
    $region27: #{tpu_custom_call.1} parent=1 // pred_check_branch
      %66 = sbr.rel (0) target = $region29
    $region28: #{tpu_custom_call.1} parent=1 // pred_region
      _
    $region29: #{tpu_custom_call.1} parent=1 // pred_fallthru
      _
    // Predicated region
    $region30: #{tpu_custom_call.1} parent=1 // pred_check
      _
    $region31: #{tpu_custom_call.1} parent=1 // pred_check_branch
      %68 = sbr.rel (0) target = $region33
    $region32: #{tpu_custom_call.1} parent=1 // pred_region
      %70 = vsyncadd [#allocation8], 0
      %s71 = sshll.u32 %s7, 4
      %s72 = int_to_ptr.hbm [resolvable:$true] %s71
      %s73 = sshll.u32 [#allocation7], 4
      %s74 = int_to_ptr.vmem [resolvable:$true] %s73
      %79 = dma.hbm_to_vmem [thread:$0]  %s72, 4096, %s74, [#allocation8], 128, 128, 8
    $region33: #{tpu_custom_call.1} parent=1 // pred_fallthru
      _
    // Predicated region
    $region34: #{tpu_custom_call.1} parent=1 // pred_check
      _
    $region35: #{tpu_custom_call.1} parent=1 // pred_check_branch
      %81 = sbr.rel (0) target = $region37
    $region36: #{tpu_custom_call.1} parent=1 // pred_region
      _
    $region37: #{tpu_custom_call.1} parent=1 // pred_fallthru
      _
    // Predicated region
    $region38: #{tpu_custom_call.1} parent=1 // pred_check
      _
    $region39: #{tpu_custom_call.1} parent=1 // pred_check_branch
      %83 = sbr.rel (0) target = $region41
    $region40: #{tpu_custom_call.1} parent=1 // pred_region
      _
    $region41: #{tpu_custom_call.1} parent=1 // pred_fallthru
      _
    // Predicated region
    $region42: #{tpu_custom_call.1} parent=1 // pred_check
      _
    $region43: #{tpu_custom_call.1} parent=1 // pred_check_branch
      %85 = sbr.rel (0) target = $region45
    $region44: #{tpu_custom_call.1} parent=1 // pred_region
      %87 = vsyncadd [#allocation8], 0
      %s89 = sshll.u32 %s10, 4
      %s90 = int_to_ptr.hbm [resolvable:$true] %s89
      %s91 = sshll.u32 [#allocation9], 4
      %s92 = int_to_ptr.vmem [resolvable:$true] %s91
      %94 = dma.hbm_to_vmem [thread:$0]  %s90, 32, %s92, [#allocation8]
    $region45: #{tpu_custom_call.1} parent=1 // pred_fallthru
      _
    // Predicated region
    $region46: #{tpu_custom_call.1} parent=1 // pred_check
      _
    $region47: #{tpu_custom_call.1} parent=1 // pred_check_branch
      %96 = sbr.rel (0) target = $region49
    $region48: #{tpu_custom_call.1} parent=1 // pred_region
      _
    $region49: #{tpu_custom_call.1} parent=1 // pred_fallthru
      _
    // Predicated region
    $region50: #{tpu_custom_call.1} parent=1 // pred_check
      _
    $region51: #{tpu_custom_call.1} parent=1 // pred_check_branch
      %98 = sbr.rel (0) target = $region53
    $region52: #{tpu_custom_call.1} parent=1 // pred_region
      %100 = dma.done [#allocation3], 512
    $region53: #{tpu_custom_call.1} parent=1 // pred_fallthru
      _
    // Predicated region
    $region54: #{tpu_custom_call.1} parent=1 // pred_check
      _
    $region55: #{tpu_custom_call.1} parent=1 // pred_check_branch
      %102 = sbr.rel (0) target = $region57
    $region56: #{tpu_custom_call.1} parent=1 // pred_region
      %104 = dma.done [#allocation5], 128
    $region57: #{tpu_custom_call.1} parent=1 // pred_fallthru
      _
    // Predicated region
    $region58: #{tpu_custom_call.1} parent=1 // pred_check
      _
    $region59: #{tpu_custom_call.1} parent=1 // pred_check_branch
      %106 = sbr.rel (0) target = $region61
    $region60: #{tpu_custom_call.1} parent=1 // pred_region
      %108 = dma.done [#allocation5], 4096
    $region61: #{tpu_custom_call.1} parent=1 // pred_fallthru
      _
    // Predicated region
    $region62: #{tpu_custom_call.1} parent=1 // pred_check
      _
    $region63: #{tpu_custom_call.1} parent=1 // pred_check_branch
      %110 = sbr.rel (0) target = $region65
    $region64: #{tpu_custom_call.1} parent=1 // pred_region
      %112 = dma.done [#allocation8], 4096
    $region65: #{tpu_custom_call.1} parent=1 // pred_fallthru
      _
    // Predicated region
    $region66: #{tpu_custom_call.1} parent=1 // pred_check
      _
    $region67: #{tpu_custom_call.1} parent=1 // pred_check_branch
      %114 = sbr.rel (0) target = $region69
    $region68: #{tpu_custom_call.1} parent=1 // pred_region
      %116 = dma.done [#allocation8], 32
    $region69: #{tpu_custom_call.1} parent=1 // pred_fallthru
      _
    %v118 = vld [vmem:[%s0] sm:$0xf]
    %v119 = vld [vmem:[%s0 + $0x4] sm:$0xf]
    %v120 = vld [vmem:[%s1] sm:$0xf]
    %v121 = vld [vmem:[%s1 + $0x4] sm:$0xf]
    %v122 = vld [vmem:[#allocation2] sm:$0xff]
    %v123 = vld [vmem:[#allocation2 + $0x8] sm:$0xff]
    %v124 = vld [vmem:[#allocation2 + $0x10] sm:$0x33]
    %v125 = vld [vmem:[#allocation2 + $0x18] sm:$0x33]
    %v126 = vld [vmem:[#allocation4] sm:$0xff]
    %v129 = vunpack.c.l.b16 %v120
    %v130 = vunpack.c.l.b16 %v121
    %v131 = vpack.c.b16 %v130, %v129
    %133 = vst [vmem:[#allocation1] ss:$4 sm:$0xff] %v126
    %v134 = vld.sshfl [vmem:[#allocation1] sm:$0xff pattern:$0x73625140]
    %v135 = vld.sshfl [vmem:[#allocation1 + $0x8] sm:$0xff pattern:$0x73625140]
    %v136 = vld.sshfl [vmem:[#allocation1 + $0x10] sm:$0xff pattern:$0x73625140]
    %v137 = vld.sshfl [vmem:[#allocation1 + $0x18] sm:$0xff pattern:$0x73625140]
    %vm138 = vcmask 31744
    %v140 = vsel %vm138, %v131, 0
    %vm142 = vcmask 1041408
    %v143 = vsel %vm142, %v134, 0
    %v145 = vsel %vm142, %v135, 0
    %v147 = vsel %vm142, %v136, 0
    %v149 = vsel %vm142, %v137, 0
    %151 = vmatpush.bf16.msra.mxu0 0
    %152 = vmatpush.bf16.msra.mxu0 0
    %153 = vmatpush.bf16.msra.mxu0 0
    %154 = vmatpush.bf16.msra.mxu0 0
    %155 = vmatpush.bf16.msra.mxu0 0
    %156 = vmatpush.bf16.msra.mxu0 0
    %157 = vmatpush.bf16.msra.mxu0 0
    %158 = vmatpush.bf16.msra.mxu0 %v143
    %159 = vmatmul.bf16.gmra.mxu0 %v140
    %v160 = vpop.f32.mrf.mxu0
    %v161 = vadd.f32 0.0, %v160
    %v162 = vpop.f32.mrf.mxu0
    %v163 = vadd.f32 0.0, %v162
    %164 = vdwg.mxu0
    %165 = vmatpush.bf16.msra.mxu0 0
    %166 = vmatpush.bf16.msra.mxu0 0
    %167 = vmatpush.bf16.msra.mxu0 0
    %168 = vmatpush.bf16.msra.mxu0 0
    %169 = vmatpush.bf16.msra.mxu0 0
    %170 = vmatpush.bf16.msra.mxu0 0
    %171 = vmatpush.bf16.msra.mxu0 0
    %172 = vmatpush.bf16.msra.mxu0 %v145
    %173 = vmatmul.bf16.gmra.mxu0 %v140
    %v174 = vpop.f32.mrf.mxu0
    %v175 = vadd.f32 0.0, %v174
    %v176 = vpop.f32.mrf.mxu0
    %v177 = vadd.f32 0.0, %v176
    %178 = vdwg.mxu0
    %179 = vmatpush.bf16.msra.mxu0 0
    %180 = vmatpush.bf16.msra.mxu0 0
    %181 = vmatpush.bf16.msra.mxu0 0
    %182 = vmatpush.bf16.msra.mxu0 0
    %183 = vmatpush.bf16.msra.mxu0 0
    %184 = vmatpush.bf16.msra.mxu0 0
    %185 = vmatpush.bf16.msra.mxu0 0
    %186 = vmatpush.bf16.msra.mxu0 %v147
    %187 = vmatmul.bf16.gmra.mxu0 %v140
    %v188 = vpop.f32.mrf.mxu0
    %v189 = vadd.f32 0.0, %v188
    %v190 = vpop.f32.mrf.mxu0
    %v191 = vadd.f32 0.0, %v190
    %192 = vdwg.mxu0
    %193 = vmatpush.bf16.msra.mxu0 0
    %194 = vmatpush.bf16.msra.mxu0 0
    %195 = vmatpush.bf16.msra.mxu0 0
    %196 = vmatpush.bf16.msra.mxu0 0
    %197 = vmatpush.bf16.msra.mxu0 0
    %198 = vmatpush.bf16.msra.mxu0 0
    %199 = vmatpush.bf16.msra.mxu0 0
    %200 = vmatpush.bf16.msra.mxu0 %v149
    %201 = vmatmul.bf16.gmra.mxu0 %v140
    %v202 = vpop.f32.mrf.mxu0
    %v203 = vadd.f32 0.0, %v202
    %v204 = vpop.f32.mrf.mxu0
    %v205 = vadd.f32 0.0, %v204
    %206 = vdwg.mxu0
    %v209 = vunpack.c.l.b16 %v118
    %v210 = vunpack.c.l.b16 %v119
    %v211 = vpack.c.b16 %v210, %v209
    %v216 = vunpack.c.l.b16 %v122
    %v217 = vunpack.c.h.b16 %v122
    %v218 = vunpack.c.l.b16 %v123
    %v219 = vunpack.c.h.b16 %v123
    %v220 = vunpack.c.l.b16 %v124
    %v221 = vunpack.c.h.b16 %v124
    %v222 = vunpack.c.l.b16 %v125
    %v223 = vunpack.c.h.b16 %v125
    %v224 = vpack.c.b16 %v220, %v216
    %v225 = vpack.c.b16 %v221, %v217
    %v226 = vpack.c.b16 %v222, %v218
    %v227 = vpack.c.b16 %v223, %v219
    %vm228 = vcmask 97280
    %v230 = vsel %vm228, %v211, 0
    %vm232 = vcmask 1045504
    %v234 = vsel %vm232, %v224, 0
    %v237 = vsel %vm232, %v225, 0
    %v240 = vsel %vm232, %v226, 0
    %v243 = vsel %vm232, %v227, 0
    %245 = vmatpush.bf16.msra.mxu0 0
    %246 = vmatpush.bf16.msra.mxu0 0
    %247 = vmatpush.bf16.msra.mxu0 0
    %248 = vmatpush.bf16.msra.mxu0 0
    %249 = vmatpush.bf16.msra.mxu0 0
    %250 = vmatpush.bf16.msra.mxu0 0
    %251 = vmatpush.bf16.msra.mxu0 0
    %252 = vmatpush.bf16.msra.mxu0 %v234
    %253 = vmatmul.bf16.gmra.mxu0 %v230
    %v254 = vpop.f32.mrf.mxu0
    %v255 = vadd.f32 %v161, %v254
    %v256 = vpop.f32.mrf.mxu0
    %v257 = vadd.f32 %v163, %v256
    %258 = vdwg.mxu0
    %259 = vmatpush.bf16.msra.mxu0 0
    %260 = vmatpush.bf16.msra.mxu0 0
    %261 = vmatpush.bf16.msra.mxu0 0
    %262 = vmatpush.bf16.msra.mxu0 0
    %263 = vmatpush.bf16.msra.mxu0 0
    %264 = vmatpush.bf16.msra.mxu0 0
    %265 = vmatpush.bf16.msra.mxu0 0
    %266 = vmatpush.bf16.msra.mxu0 %v237
    %267 = vmatmul.bf16.gmra.mxu0 %v230
    %v268 = vpop.f32.mrf.mxu0
    %v269 = vadd.f32 %v175, %v268
    %v270 = vpop.f32.mrf.mxu0
    %v271 = vadd.f32 %v177, %v270
    %272 = vdwg.mxu0
    %273 = vmatpush.bf16.msra.mxu0 0
    %274 = vmatpush.bf16.msra.mxu0 0
    %275 = vmatpush.bf16.msra.mxu0 0
    %276 = vmatpush.bf16.msra.mxu0 0
    %277 = vmatpush.bf16.msra.mxu0 0
    %278 = vmatpush.bf16.msra.mxu0 0
    %279 = vmatpush.bf16.msra.mxu0 0
    %280 = vmatpush.bf16.msra.mxu0 %v240
    %281 = vmatmul.bf16.gmra.mxu0 %v230
    %v282 = vpop.f32.mrf.mxu0
    %v283 = vadd.f32 %v189, %v282
    %v284 = vpop.f32.mrf.mxu0
    %v285 = vadd.f32 %v191, %v284
    %286 = vdwg.mxu0
    %287 = vmatpush.bf16.msra.mxu0 0
    %288 = vmatpush.bf16.msra.mxu0 0
    %289 = vmatpush.bf16.msra.mxu0 0
    %290 = vmatpush.bf16.msra.mxu0 0
    %291 = vmatpush.bf16.msra.mxu0 0
    %292 = vmatpush.bf16.msra.mxu0 0
    %293 = vmatpush.bf16.msra.mxu0 0
    %294 = vmatpush.bf16.msra.mxu0 %v243
    %295 = vmatmul.bf16.gmra.mxu0 %v230
    %v296 = vpop.f32.mrf.mxu0
    %v297 = vadd.f32 %v203, %v296
    %v298 = vpop.f32.mrf.mxu0
    %v299 = vadd.f32 %v205, %v298
    %300 = vdwg.mxu0
    %v301 = vld [vmem:[%s4] sm:$0xf]
    %v303 = vperm.slane %v301, 0
    %v304 = vperm.slane %v301, 1
    %v305 = vperm.slane %v301, 2
    %v306 = vperm.slane %v301, 3
    %v311 = vadd.f32 %v255, %v303
    %v312 = vadd.f32 %v269, %v304
    %v313 = vadd.f32 %v283, %v305
    %v314 = vadd.f32 %v297, %v306
    %v315 = vadd.f32 %v257, %v303
    %v316 = vadd.f32 %v271, %v304
    %v317 = vadd.f32 %v285, %v305
    %v318 = vadd.f32 %v299, %v306
    %v319 = vmax.f32 %v311, 0.0
    %v320 = vmax.f32 %v312, 0.0
    %v321 = vmax.f32 %v313, 0.0
    %v322 = vmax.f32 %v314, 0.0
    %v323 = vmax.f32 %v315, 0.0
    %v324 = vmax.f32 %v316, 0.0
    %v325 = vmax.f32 %v317, 0.0
    %v326 = vmax.f32 %v318, 0.0
    %v327 = vpack.c.bf16 %v320, %v319
    %v328 = vpack.c.bf16 %v322, %v321
    %v329 = vpack.c.bf16 %v324, %v323
    %v330 = vpack.c.bf16 %v326, %v325
    %v331 = vld [vmem:[#allocation6] sm:$0xff]
    %v332 = vld [vmem:[#allocation6 + $0x8] sm:$0xff]
    %v333 = vld [vmem:[#allocation6 + $0x10] sm:$0xff]
    %v334 = vld [vmem:[#allocation6 + $0x18] sm:$0xff]
    %v335 = vld [vmem:[#allocation6 + $0x20] sm:$0xff]
    %v336 = vld [vmem:[#allocation6 + $0x28] sm:$0xff]
    %v337 = vld [vmem:[#allocation6 + $0x30] sm:$0xff]
    %v338 = vld [vmem:[#allocation6 + $0x38] sm:$0xff]
    %v339 = vld [vmem:[#allocation6 + $0x40] sm:$0xff]
    %v340 = vld [vmem:[#allocation6 + $0x48] sm:$0xff]
    %v341 = vld [vmem:[#allocation6 + $0x50] sm:$0xff]
    %v342 = vld [vmem:[#allocation6 + $0x58] sm:$0xff]
    %v343 = vld [vmem:[#allocation6 + $0x60] sm:$0xff]
    %v344 = vld [vmem:[#allocation6 + $0x68] sm:$0xff]
    %v345 = vld [vmem:[#allocation6 + $0x70] sm:$0xff]
    %v346 = vld [vmem:[#allocation6 + $0x78] sm:$0xff]
    %v347 = vld [vmem:[#allocation6 + $0x80] sm:$0xff]
    %v348 = vld [vmem:[#allocation6 + $0x88] sm:$0xff]
    %v349 = vld [vmem:[#allocation6 + $0x90] sm:$0xff]
    %v350 = vld [vmem:[#allocation6 + $0x98] sm:$0xff]
    %v351 = vld [vmem:[#allocation6 + $0xa0] sm:$0xff]
    %v352 = vld [vmem:[#allocation6 + $0xa8] sm:$0xff]
    %v353 = vld [vmem:[#allocation6 + $0xb0] sm:$0xff]
    %v354 = vld [vmem:[#allocation6 + $0xb8] sm:$0xff]
    %v355 = vld [vmem:[#allocation6 + $0xc0] sm:$0xff]
    %v356 = vld [vmem:[#allocation6 + $0xc8] sm:$0xff]
    %v357 = vld [vmem:[#allocation6 + $0xd0] sm:$0xff]
    %v358 = vld [vmem:[#allocation6 + $0xd8] sm:$0xff]
    %v359 = vld [vmem:[#allocation6 + $0xe0] sm:$0xff]
    %v360 = vld [vmem:[#allocation6 + $0xe8] sm:$0xff]
    %v361 = vld [vmem:[#allocation6 + $0xf0] sm:$0xff]
    %v362 = vld [vmem:[#allocation6 + $0xf8] sm:$0xff]
    %v363 = vld [vmem:[%s6] sm:$0x3]
    %v365 = vperm.slane %v363, 0
    %v366 = vperm.slane %v363, 1
    %v371 = vunpack.c.l.b16 %v327
    %v372 = vunpack.c.h.b16 %v327
    %v373 = vunpack.c.l.b16 %v329
    %v374 = vunpack.c.h.b16 %v329
    %v375 = vpack.c.b16 %v373, %v371
    %v376 = vpack.c.b16 %v374, %v372
    %v411 = vunpack.c.l.b16 %v331
    %v412 = vunpack.c.h.b16 %v331
    %v413 = vunpack.c.l.b16 %v332
    %v414 = vunpack.c.h.b16 %v332
    %v415 = vunpack.c.l.b16 %v333
    %v416 = vunpack.c.h.b16 %v333
    %v417 = vunpack.c.l.b16 %v334
    %v418 = vunpack.c.h.b16 %v334
    %v419 = vunpack.c.l.b16 %v335
    %v420 = vunpack.c.h.b16 %v335
    %v421 = vunpack.c.l.b16 %v336
    %v422 = vunpack.c.h.b16 %v336
    %v423 = vunpack.c.l.b16 %v337
    %v424 = vunpack.c.h.b16 %v337
    %v425 = vunpack.c.l.b16 %v338
    %v426 = vunpack.c.h.b16 %v338
    %v427 = vunpack.c.l.b16 %v339
    %v428 = vunpack.c.h.b16 %v339
    %v429 = vunpack.c.l.b16 %v340
    %v430 = vunpack.c.h.b16 %v340
    %v431 = vunpack.c.l.b16 %v341
    %v432 = vunpack.c.h.b16 %v341
    %v433 = vunpack.c.l.b16 %v342
    %v434 = vunpack.c.h.b16 %v342
    %v435 = vunpack.c.l.b16 %v343
    %v436 = vunpack.c.h.b16 %v343
    %v437 = vunpack.c.l.b16 %v344
    %v438 = vunpack.c.h.b16 %v344
    %v439 = vunpack.c.l.b16 %v345
    %v440 = vunpack.c.h.b16 %v345
    %v441 = vunpack.c.l.b16 %v346
    %v442 = vunpack.c.h.b16 %v346
    %v443 = vunpack.c.l.b16 %v347
    %v444 = vunpack.c.h.b16 %v347
    %v445 = vunpack.c.l.b16 %v348
    %v446 = vunpack.c.h.b16 %v348
    %v447 = vunpack.c.l.b16 %v349
    %v448 = vunpack.c.h.b16 %v349
    %v449 = vunpack.c.l.b16 %v350
    %v450 = vunpack.c.h.b16 %v350
    %v451 = vunpack.c.l.b16 %v351
    %v452 = vunpack.c.h.b16 %v351
    %v453 = vunpack.c.l.b16 %v352
    %v454 = vunpack.c.h.b16 %v352
    %v455 = vunpack.c.l.b16 %v353
    %v456 = vunpack.c.h.b16 %v353
    %v457 = vunpack.c.l.b16 %v354
    %v458 = vunpack.c.h.b16 %v354
    %v459 = vunpack.c.l.b16 %v355
    %v460 = vunpack.c.h.b16 %v355
    %v461 = vunpack.c.l.b16 %v356
    %v462 = vunpack.c.h.b16 %v356
    %v463 = vunpack.c.l.b16 %v357
    %v464 = vunpack.c.h.b16 %v357
    %v465 = vunpack.c.l.b16 %v358
    %v466 = vunpack.c.h.b16 %v358
    %v467 = vunpack.c.l.b16 %v359
    %v468 = vunpack.c.h.b16 %v359
    %v469 = vunpack.c.l.b16 %v360
    %v470 = vunpack.c.h.b16 %v360
    %v471 = vunpack.c.l.b16 %v361
    %v472 = vunpack.c.h.b16 %v361
    %v473 = vunpack.c.l.b16 %v362
    %v474 = vunpack.c.h.b16 %v362
    %v475 = vpack.c.b16 %v413, %v411
    %v476 = vpack.c.b16 %v414, %v412
    %v477 = vpack.c.b16 %v417, %v415
    %v478 = vpack.c.b16 %v418, %v416
    %v479 = vpack.c.b16 %v421, %v419
    %v480 = vpack.c.b16 %v422, %v420
    %v481 = vpack.c.b16 %v425, %v423
    %v482 = vpack.c.b16 %v426, %v424
    %v483 = vpack.c.b16 %v429, %v427
    %v484 = vpack.c.b16 %v430, %v428
    %v485 = vpack.c.b16 %v433, %v431
    %v486 = vpack.c.b16 %v434, %v432
    %v487 = vpack.c.b16 %v437, %v435
    %v488 = vpack.c.b16 %v438, %v436
    %v489 = vpack.c.b16 %v441, %v439
    %v490 = vpack.c.b16 %v442, %v440
    %v491 = vpack.c.b16 %v445, %v443
    %v492 = vpack.c.b16 %v446, %v444
    %v493 = vpack.c.b16 %v449, %v447
    %v494 = vpack.c.b16 %v450, %v448
    %v495 = vpack.c.b16 %v453, %v451
    %v496 = vpack.c.b16 %v454, %v452
    %v497 = vpack.c.b16 %v457, %v455
    %v498 = vpack.c.b16 %v458, %v456
    %v499 = vpack.c.b16 %v461, %v459
    %v500 = vpack.c.b16 %v462, %v460
    %v501 = vpack.c.b16 %v465, %v463
    %v502 = vpack.c.b16 %v466, %v464
    %v503 = vpack.c.b16 %v469, %v467
    %v504 = vpack.c.b16 %v470, %v468
    %v505 = vpack.c.b16 %v473, %v471
    %v506 = vpack.c.b16 %v474, %v472
    %539 = vmatpush.bf16.msra.mxu0 %v489
    %540 = vmatpush.bf16.msra.mxu0 %v487
    %541 = vmatpush.bf16.msra.mxu0 %v485
    %542 = vmatpush.bf16.msra.mxu0 %v483
    %543 = vmatpush.bf16.msra.mxu0 %v481
    %544 = vmatpush.bf16.msra.mxu0 %v479
    %545 = vmatpush.bf16.msra.mxu0 %v477
    %546 = vmatpush.bf16.msra.mxu0 %v475
    %547 = vmatmul.bf16.gmra.mxu0 %v375
    %v548 = vpop.f32.mrf.mxu0
    %v549 = vadd.f32 %v365, %v548
    %v550 = vpop.f32.mrf.mxu0
    %v551 = vadd.f32 %v365, %v550
    %552 = vdwg.mxu0
    %553 = vmatpush.bf16.msra.mxu0 %v505
    %554 = vmatpush.bf16.msra.mxu0 %v503
    %555 = vmatpush.bf16.msra.mxu0 %v501
    %556 = vmatpush.bf16.msra.mxu0 %v499
    %557 = vmatpush.bf16.msra.mxu0 %v497
    %558 = vmatpush.bf16.msra.mxu0 %v495
    %559 = vmatpush.bf16.msra.mxu0 %v493
    %560 = vmatpush.bf16.msra.mxu0 %v491
    %561 = vmatmul.bf16.gmra.mxu0 %v376
    %v562 = vpop.f32.mrf.mxu0
    %v563 = vadd.f32 %v549, %v562
    %v564 = vpop.f32.mrf.mxu0
    %v565 = vadd.f32 %v551, %v564
    %566 = vdwg.mxu0
    %567 = vmatpush.bf16.msra.mxu0 %v490
    %568 = vmatpush.bf16.msra.mxu0 %v488
    %569 = vmatpush.bf16.msra.mxu0 %v486
    %570 = vmatpush.bf16.msra.mxu0 %v484
    %571 = vmatpush.bf16.msra.mxu0 %v482
    %572 = vmatpush.bf16.msra.mxu0 %v480
    %573 = vmatpush.bf16.msra.mxu0 %v478
    %574 = vmatpush.bf16.msra.mxu0 %v476
    %575 = vmatmul.bf16.gmra.mxu0 %v375
    %v576 = vpop.f32.mrf.mxu0
    %v577 = vadd.f32 %v366, %v576
    %v578 = vpop.f32.mrf.mxu0
    %v579 = vadd.f32 %v366, %v578
    %580 = vdwg.mxu0
    %581 = vmatpush.bf16.msra.mxu0 %v506
    %582 = vmatpush.bf16.msra.mxu0 %v504
    %583 = vmatpush.bf16.msra.mxu0 %v502
    %584 = vmatpush.bf16.msra.mxu0 %v500
    %585 = vmatpush.bf16.msra.mxu0 %v498
    %586 = vmatpush.bf16.msra.mxu0 %v496
    %587 = vmatpush.bf16.msra.mxu0 %v494
    %588 = vmatpush.bf16.msra.mxu0 %v492
    %589 = vmatmul.bf16.gmra.mxu0 %v376
    %v590 = vpop.f32.mrf.mxu0
    %v591 = vadd.f32 %v577, %v590
    %v592 = vpop.f32.mrf.mxu0
    %v593 = vadd.f32 %v579, %v592
    %594 = vdwg.mxu0
    %v595 = vmax.f32 %v563, 0.0
    %v596 = vmax.f32 %v591, 0.0
    %v597 = vmax.f32 %v565, 0.0
    %v598 = vmax.f32 %v593, 0.0
    %v599 = vld [vmem:[#allocation7] sm:$0xff]
    %v600 = vld [vmem:[#allocation7 + $0x8] sm:$0xff]
    %v601 = vld [vmem:[#allocation7 + $0x10] sm:$0xff]
    %v602 = vld [vmem:[#allocation7 + $0x18] sm:$0xff]
    %v603 = vld [vmem:[#allocation7 + $0x20] sm:$0xff]
    %v604 = vld [vmem:[#allocation7 + $0x28] sm:$0xff]
    %v605 = vld [vmem:[#allocation7 + $0x30] sm:$0xff]
    %v606 = vld [vmem:[#allocation7 + $0x38] sm:$0xff]
    %v607 = vld [vmem:[#allocation7 + $0x40] sm:$0xff]
    %v608 = vld [vmem:[#allocation7 + $0x48] sm:$0xff]
    %v609 = vld [vmem:[#allocation7 + $0x50] sm:$0xff]
    %v610 = vld [vmem:[#allocation7 + $0x58] sm:$0xff]
    %v611 = vld [vmem:[#allocation7 + $0x60] sm:$0xff]
    %v612 = vld [vmem:[#allocation7 + $0x68] sm:$0xff]
    %v613 = vld [vmem:[#allocation7 + $0x70] sm:$0xff]
    %v614 = vld [vmem:[#allocation7 + $0x78] sm:$0xff]
    %v615 = vld [vmem:[#allocation7 + $0x80] sm:$0xff]
    %v616 = vld [vmem:[#allocation7 + $0x88] sm:$0xff]
    %v617 = vld [vmem:[#allocation7 + $0x90] sm:$0xff]
    %v618 = vld [vmem:[#allocation7 + $0x98] sm:$0xff]
    %v619 = vld [vmem:[#allocation7 + $0xa0] sm:$0xff]
    %v620 = vld [vmem:[#allocation7 + $0xa8] sm:$0xff]
    %v621 = vld [vmem:[#allocation7 + $0xb0] sm:$0xff]
    %v622 = vld [vmem:[#allocation7 + $0xb8] sm:$0xff]
    %v623 = vld [vmem:[#allocation7 + $0xc0] sm:$0xff]
    %v624 = vld [vmem:[#allocation7 + $0xc8] sm:$0xff]
    %v625 = vld [vmem:[#allocation7 + $0xd0] sm:$0xff]
    %v626 = vld [vmem:[#allocation7 + $0xd8] sm:$0xff]
    %v627 = vld [vmem:[#allocation7 + $0xe0] sm:$0xff]
    %v628 = vld [vmem:[#allocation7 + $0xe8] sm:$0xff]
    %v629 = vld [vmem:[#allocation7 + $0xf0] sm:$0xff]
    %v630 = vld [vmem:[#allocation7 + $0xf8] sm:$0xff]
    %v631 = vld [vmem:[%s8] sm:$0x3]
    %v633 = vperm.slane %v631, 0
    %v634 = vperm.slane %v631, 1
    %v639 = vunpack.c.l.b16 %v328
    %v640 = vunpack.c.h.b16 %v328
    %v641 = vunpack.c.l.b16 %v330
    %v642 = vunpack.c.h.b16 %v330
    %v643 = vpack.c.b16 %v641, %v639
    %v644 = vpack.c.b16 %v642, %v640
    %v679 = vunpack.c.l.b16 %v599
    %v680 = vunpack.c.h.b16 %v599
    %v681 = vunpack.c.l.b16 %v600
    %v682 = vunpack.c.h.b16 %v600
    %v683 = vunpack.c.l.b16 %v601
    %v684 = vunpack.c.h.b16 %v601
    %v685 = vunpack.c.l.b16 %v602
    %v686 = vunpack.c.h.b16 %v602
    %v687 = vunpack.c.l.b16 %v603
    %v688 = vunpack.c.h.b16 %v603
    %v689 = vunpack.c.l.b16 %v604
    %v690 = vunpack.c.h.b16 %v604
    %v691 = vunpack.c.l.b16 %v605
    %v692 = vunpack.c.h.b16 %v605
    %v693 = vunpack.c.l.b16 %v606
    %v694 = vunpack.c.h.b16 %v606
    %v695 = vunpack.c.l.b16 %v607
    %v696 = vunpack.c.h.b16 %v607
    %v697 = vunpack.c.l.b16 %v608
    %v698 = vunpack.c.h.b16 %v608
    %v699 = vunpack.c.l.b16 %v609
    %v700 = vunpack.c.h.b16 %v609
    %v701 = vunpack.c.l.b16 %v610
    %v702 = vunpack.c.h.b16 %v610
    %v703 = vunpack.c.l.b16 %v611
    %v704 = vunpack.c.h.b16 %v611
    %v705 = vunpack.c.l.b16 %v612
    %v706 = vunpack.c.h.b16 %v612
    %v707 = vunpack.c.l.b16 %v613
    %v708 = vunpack.c.h.b16 %v613
    %v709 = vunpack.c.l.b16 %v614
    %v710 = vunpack.c.h.b16 %v614
    %v711 = vunpack.c.l.b16 %v615
    %v712 = vunpack.c.h.b16 %v615
    %v713 = vunpack.c.l.b16 %v616
    %v714 = vunpack.c.h.b16 %v616
    %v715 = vunpack.c.l.b16 %v617
    %v716 = vunpack.c.h.b16 %v617
    %v717 = vunpack.c.l.b16 %v618
    %v718 = vunpack.c.h.b16 %v618
    %v719 = vunpack.c.l.b16 %v619
    %v720 = vunpack.c.h.b16 %v619
    %v721 = vunpack.c.l.b16 %v620
    %v722 = vunpack.c.h.b16 %v620
    %v723 = vunpack.c.l.b16 %v621
    %v724 = vunpack.c.h.b16 %v621
    %v725 = vunpack.c.l.b16 %v622
    %v726 = vunpack.c.h.b16 %v622
    %v727 = vunpack.c.l.b16 %v623
    %v728 = vunpack.c.h.b16 %v623
    %v729 = vunpack.c.l.b16 %v624
    %v730 = vunpack.c.h.b16 %v624
    %v731 = vunpack.c.l.b16 %v625
    %v732 = vunpack.c.h.b16 %v625
    %v733 = vunpack.c.l.b16 %v626
    %v734 = vunpack.c.h.b16 %v626
    %v735 = vunpack.c.l.b16 %v627
    %v736 = vunpack.c.h.b16 %v627
    %v737 = vunpack.c.l.b16 %v628
    %v738 = vunpack.c.h.b16 %v628
    %v739 = vunpack.c.l.b16 %v629
    %v740 = vunpack.c.h.b16 %v629
    %v741 = vunpack.c.l.b16 %v630
    %v742 = vunpack.c.h.b16 %v630
    %v743 = vpack.c.b16 %v681, %v679
    %v744 = vpack.c.b16 %v682, %v680
    %v745 = vpack.c.b16 %v685, %v683
    %v746 = vpack.c.b16 %v686, %v684
    %v747 = vpack.c.b16 %v689, %v687
    %v748 = vpack.c.b16 %v690, %v688
    %v749 = vpack.c.b16 %v693, %v691
    %v750 = vpack.c.b16 %v694, %v692
    %v751 = vpack.c.b16 %v697, %v695
    %v752 = vpack.c.b16 %v698, %v696
    %v753 = vpack.c.b16 %v701, %v699
    %v754 = vpack.c.b16 %v702, %v700
    %v755 = vpack.c.b16 %v705, %v703
    %v756 = vpack.c.b16 %v706, %v704
    %v757 = vpack.c.b16 %v709, %v707
    %v758 = vpack.c.b16 %v710, %v708
    %v759 = vpack.c.b16 %v713, %v711
    %v760 = vpack.c.b16 %v714, %v712
    %v761 = vpack.c.b16 %v717, %v715
    %v762 = vpack.c.b16 %v718, %v716
    %v763 = vpack.c.b16 %v721, %v719
    %v764 = vpack.c.b16 %v722, %v720
    %v765 = vpack.c.b16 %v725, %v723
    %v766 = vpack.c.b16 %v726, %v724
    %v767 = vpack.c.b16 %v729, %v727
    %v768 = vpack.c.b16 %v730, %v728
    %v769 = vpack.c.b16 %v733, %v731
    %v770 = vpack.c.b16 %v734, %v732
    %v771 = vpack.c.b16 %v737, %v735
    %v772 = vpack.c.b16 %v738, %v736
    %v773 = vpack.c.b16 %v741, %v739
    %v774 = vpack.c.b16 %v742, %v740
    %807 = vmatpush.bf16.msra.mxu0 %v757
    %808 = vmatpush.bf16.msra.mxu0 %v755
    %809 = vmatpush.bf16.msra.mxu0 %v753
    %810 = vmatpush.bf16.msra.mxu0 %v751
    %811 = vmatpush.bf16.msra.mxu0 %v749
    %812 = vmatpush.bf16.msra.mxu0 %v747
    %813 = vmatpush.bf16.msra.mxu0 %v745
    %814 = vmatpush.bf16.msra.mxu0 %v743
    %815 = vmatmul.bf16.gmra.mxu0 %v643
    %v816 = vpop.f32.mrf.mxu0
    %v817 = vadd.f32 %v633, %v816
    %v818 = vpop.f32.mrf.mxu0
    %v819 = vadd.f32 %v633, %v818
    %820 = vdwg.mxu0
    %821 = vmatpush.bf16.msra.mxu0 %v773
    %822 = vmatpush.bf16.msra.mxu0 %v771
    %823 = vmatpush.bf16.msra.mxu0 %v769
    %824 = vmatpush.bf16.msra.mxu0 %v767
    %825 = vmatpush.bf16.msra.mxu0 %v765
    %826 = vmatpush.bf16.msra.mxu0 %v763
    %827 = vmatpush.bf16.msra.mxu0 %v761
    %828 = vmatpush.bf16.msra.mxu0 %v759
    %829 = vmatmul.bf16.gmra.mxu0 %v644
    %v830 = vpop.f32.mrf.mxu0
    %v831 = vadd.f32 %v817, %v830
    %v832 = vpop.f32.mrf.mxu0
    %v833 = vadd.f32 %v819, %v832
    %834 = vdwg.mxu0
    %835 = vmatpush.bf16.msra.mxu0 %v758
    %836 = vmatpush.bf16.msra.mxu0 %v756
    %837 = vmatpush.bf16.msra.mxu0 %v754
    %838 = vmatpush.bf16.msra.mxu0 %v752
    %839 = vmatpush.bf16.msra.mxu0 %v750
    %840 = vmatpush.bf16.msra.mxu0 %v748
    %841 = vmatpush.bf16.msra.mxu0 %v746
    %842 = vmatpush.bf16.msra.mxu0 %v744
    %843 = vmatmul.bf16.gmra.mxu0 %v643
    %v844 = vpop.f32.mrf.mxu0
    %v845 = vadd.f32 %v634, %v844
    %v846 = vpop.f32.mrf.mxu0
    %v847 = vadd.f32 %v634, %v846
    %848 = vdwg.mxu0
    %849 = vmatpush.bf16.msra.mxu0 %v774
    %850 = vmatpush.bf16.msra.mxu0 %v772
    %851 = vmatpush.bf16.msra.mxu0 %v770
    %852 = vmatpush.bf16.msra.mxu0 %v768
    %853 = vmatpush.bf16.msra.mxu0 %v766
    %854 = vmatpush.bf16.msra.mxu0 %v764
    %855 = vmatpush.bf16.msra.mxu0 %v762
    %856 = vmatpush.bf16.msra.mxu0 %v760
    %857 = vmatmul.bf16.gmra.mxu0 %v644
    %v858 = vpop.f32.mrf.mxu0
    %v859 = vadd.f32 %v845, %v858
    %v860 = vpop.f32.mrf.mxu0
    %v861 = vadd.f32 %v847, %v860
    %862 = vdwg.mxu0
    %v863 = vmax.f32 %v831, 0.0
    %v864 = vmax.f32 %v859, 0.0
    %v865 = vmax.f32 %v833, 0.0
    %v866 = vmax.f32 %v861, 0.0
    %v867 = vld [vmem:[%s9] sm:$0x3]
    %v868 = vunpack.c.l.bf16 %v867
    %v869 = vld [vmem:[#allocation9] sm:$0x3]
    %v870 = vunpack.c.l.bf16 %v869
    %v872 = vperm.slane %v868, 0
    %v873 = vperm.slane %v868, 2
    %v876 = vperm.slane %v872, 0
    %v877 = vperm.slane %v873, 0
    %v878 = vmul.f32 %v595, %v876
    %v879 = vmul.f32 %v596, %v877
    %v880 = vmul.f32 %v597, %v876
    %v881 = vmul.f32 %v598, %v877
    %v882 = vadd.f32 %v878, %v879
    %883 = vadd.xlane.f32.xlu0 %v882
    %v884 = vpop.xlane.xlu0 %883
    %v885 = vadd.f32 %v880, %v881
    %886 = vadd.xlane.f32.xlu0 %v885
    %v887 = vpop.xlane.xlu0 %886
    %v888 = vld [vmem:[%s11] sm:$0x1]
    %v890 = vperm.slane %v888, 0
    %v892 = vadd.f32 %v884, %v890
    %v893 = vadd.f32 %v887, %v890
    %v895 = vperm.slane %v870, 0
    %v896 = vperm.slane %v870, 2
    %v899 = vperm.slane %v895, 0
    %v900 = vperm.slane %v896, 0
    %v901 = vmul.f32 %v863, %v899
    %v902 = vmul.f32 %v864, %v900
    %v903 = vmul.f32 %v865, %v899
    %v904 = vmul.f32 %v866, %v900
    %v905 = vadd.f32 %v901, %v902
    %906 = vadd.xlane.f32.xlu0 %v905
    %v907 = vpop.xlane.xlu0 %906
    %v908 = vadd.f32 %v903, %v904
    %909 = vadd.xlane.f32.xlu0 %v908
    %v910 = vpop.xlane.xlu0 %909
    %v911 = vadd.f32 %v907, %v890
    %v912 = vadd.f32 %v910, %v890
    %vm913 = vcmask 7168
    %914 = vst.msk [vmem:[%s12] sm:$0xff] %vm913, %v892
    %915 = vst.msk [vmem:[%s12 + $0x8] sm:$0xff] %vm913, %v893
    %918 = vrot.lane.b32.xlu0 %v911, 127
    %v919 = vpop.permute.xlu0 %918
    %920 = vrot.lane.b32.xlu0 %v912, 127
    %v921 = vpop.permute.xlu0 %920
    %924 = vst.msk [vmem:[%s13] sm:$0xff] %vm913, %v919
    %925 = vst.msk [vmem:[%s13 + $0x8] sm:$0xff] %vm913, %v921
    // Predicated region
    $region70: #{tpu_custom_call.1} parent=1 // pred_check
      _
    $region71: #{tpu_custom_call.1} parent=1 // pred_check_branch
      %927 = sbr.rel (0) target = $region73
    $region72: #{tpu_custom_call.1} parent=1 // pred_region
      _
    $region73: #{tpu_custom_call.1} parent=1 // pred_fallthru
      _
    // Predicated region
    $region74: #{tpu_custom_call.1} parent=1 // pred_check
      _
    $region75: #{tpu_custom_call.1} parent=1 // pred_check_branch
      %929 = sbr.rel (0) target = $region77
    $region76: #{tpu_custom_call.1} parent=1 // pred_region
      _
    $region77: #{tpu_custom_call.1} parent=1 // pred_fallthru
      _
    // Predicated region
    $region78: #{tpu_custom_call.1} parent=1 // pred_check
      _
    $region79: #{tpu_custom_call.1} parent=1 // pred_check_branch
      %931 = sbr.rel (0) target = $region81
    $region80: #{tpu_custom_call.1} parent=1 // pred_region
      _
    $region81: #{tpu_custom_call.1} parent=1 // pred_fallthru
      _
    // Predicated region
    $region82: #{tpu_custom_call.1} parent=1 // pred_check
      _
    $region83: #{tpu_custom_call.1} parent=1 // pred_check_branch
      %933 = sbr.rel (0) target = $region85
    $region84: #{tpu_custom_call.1} parent=1 // pred_region
      _
    $region85: #{tpu_custom_call.1} parent=1 // pred_fallthru
      _
    %934 = vsyncpa [#allocation3], 1
    %935 = vsyncpa [#allocation5], 1
    %936 = vsyncpa [#allocation8], 1

</llo_original>
